<compile_context>
chip_gen: v6e
topology: v6e:2x2x1
jax: 0.10.0
libtpu: 0.0.40
codegen_flags: <defaults>
</compile_context>

<pallas_src>
import functools

import jax
import jax.numpy as jnp
from jax import lax
from jax.experimental import pallas as pl
from jax.experimental.pallas import tpu as pltpu


_SMALL_PROBLEM_BYTES = 256 * 1024          # below this, plain jnp beats a custom call
_X_BUFFER_BUDGET_BYTES = 8 * 1024 * 1024   # per-buffer x target (double-buffered)


def _clfnet_kernel(x_ref, w_ref, b_ref, a_ref, o_ref):
    """One batch tile: x (TB, F) -> o (1, 1, TB)."""
    x = x_ref[...].astype(jnp.float32)   # native-dtype DMA, cast on VPU (v5e: no bf16 VPU)
    w = w_ref[...]                       # (1, F) f32, resident VMEM
    b = b_ref[0]                         # scalar, SMEM
    a = a_ref[0]                         # scalar, SMEM (PReLU slope)

    # Linear(F, 1) for the whole tile on the MXU: contract the last dims of
    # w (1, F) and x (TB, F)  ->  (1, TB).  Lane-dense result, f32 accumulation.
    y = lax.dot_general(w, x, (((1,), (1,)), ((), ())),
                        preferred_element_type=jnp.float32) + b

    # PReLU (single shared parameter), then the outer F.relu.
    y = jnp.maximum(y, 0.0) + a * jnp.minimum(y, 0.0)
    y = jnp.maximum(y, 0.0)

    # Lane-dense store: one (1, 1, TB) row per tile.
    o_ref[...] = y.reshape(o_ref.shape).astype(o_ref.dtype)


def _choose_tile_rows(batch, bytes_per_row,
                      *, x_buffer_budget_bytes=_X_BUFFER_BUDGET_BYTES):
    """Row-tile size: ~8 MiB per x buffer, multiple of 128 once B >= 128."""
    if batch < 128:
        # Tiny batch: one exact block (multiple of 8), no lane padding games.
        return max(8, ((batch + 7) // 8) * 8)

    rows = x_buffer_budget_bytes // bytes_per_row
    rows = max(128, (rows // 128) * 128)          # lane-dense output width

    if batch >= 256:
        # Keep >= 2 tiles so both v7x TensorCores get work (no-op on v5e/v6e).
        half = (((batch + 1) // 2) + 127) // 128 * 128
        rows = min(rows, half)

    # Never exceed the 128-rounded batch (avoids a mostly-padded single tile).
    rows = min(rows, ((batch + 127) // 128) * 128)
    return max(128, rows)


@functools.partial(jax.jit, static_argnames=("force_pallas",))
def clfnet_forward(x, weight, bias, prelu_a, force_pallas=False):
    """x: (B, F) any float dtype; weight: (1, F) (PyTorch layout); bias, prelu_a: (1,)."""
    B, F = x.shape
    itemsize = jnp.dtype(x.dtype).itemsize

    # Tiny-problem dispatch: the custom-call launch would dominate.
    if not force_pallas and B * F * itemsize < _SMALL_PROBLEM_BYTES:
        return _ref_forward(x.astype(jnp.float32), weight, bias, prelu_a)

    TB = _choose_tile_rows(B, F * itemsize)
    num_tiles = pl.cdiv(B, TB)

    w_row = weight.reshape(1, F).astype(jnp.float32)
    b_s = bias.reshape(1).astype(jnp.float32)
    a_s = prelu_a.reshape(1).astype(jnp.float32)

    x_tile_bytes = TB * F * itemsize
    out_tile_bytes = TB * 4
    vmem_need = 2 * (x_tile_bytes + out_tile_bytes) + 2 * F * 4
    # Headroom for Mosaic internals; stays <= 48 MiB (v7x has 64 MiB physical).
    vmem_limit = int(min(48 * 1024 * 1024,
                         max(32 * 1024 * 1024, vmem_need + (8 << 20))))

    out = pl.pallas_call(
        _clfnet_kernel,
        out_shape=jax.ShapeDtypeStruct((num_tiles, 1, TB), jnp.float32),
        grid_spec=pltpu.PrefetchScalarGridSpec(
            num_scalar_prefetch=0,
            grid=(num_tiles,),
            in_specs=[
                # x tile: last (partial) block reads don't-care rows, sliced off below.
                pl.BlockSpec((TB, F), lambda i: (i, 0)),
                pl.BlockSpec((1, F), lambda i: (0, 0)),               # weight row
                pl.BlockSpec(memory_space=pltpu.MemorySpace.SMEM),    # bias scalar
                pl.BlockSpec(memory_space=pltpu.MemorySpace.SMEM),    # prelu scalar
            ],
            out_specs=pl.BlockSpec((1, 1, TB), lambda i: (i, 0, 0)),
        ),
        compiler_params=pltpu.CompilerParams(
            dimension_semantics=("parallel",),
            vmem_limit_bytes=vmem_limit,
        ),
        cost_estimate=pl.CostEstimate(
            flops=2 * num_tiles * TB * F,
            transcendentals=0,
            bytes_accessed=num_tiles * TB * F * itemsize
            + num_tiles * TB * 4 + F * 4 + 8,
        ),
    )(x, w_row, b_s, a_s)

    # (num_tiles, 1, TB) -> (B, 1), dropping the padded tail of the last tile.
    return out.reshape(num_tiles * TB)[:B].reshape(B, 1)


def init_params(key, num_features):
    """Deterministic parameter init mimicking nn.Linear + nn.PReLU."""
    kw, kb = jax.random.split(key)
    bound = 1.0 / jnp.sqrt(jnp.float32(num_features))
    weight = jax.random.uniform(                 # nn.Linear(F, 1).weight: (1, F)
        kw, (1, num_features), dtype=jnp.float32, minval=-bound, maxval=bound)
    bias = jax.random.uniform(                   # nn.Linear(F, 1).bias: (1,)
        kb, (1,), dtype=jnp.float32, minval=-bound, maxval=bound)
    prelu_a = jnp.full((1,), 0.25, dtype=jnp.float32)  # nn.PReLU() default
    return weight, bias, prelu_a


def _ref_forward(x, weight, bias, prelu_a):
    y = x @ weight.T + bias                                  # Linear
    y = jnp.maximum(y, 0.0) + prelu_a * jnp.minimum(y, 0.0)  # PReLU
    return jnp.maximum(y, 0.0)                               # outer F.relu


if __name__ == "__main__":
    # Small case consistent with the module (batch=8, num_features=32);
    # force_pallas exercises the kernel even below the tiny-problem threshold.
    num_features = 32
    batch = 8
    key = jax.random.PRNGKey(0)
    kx, kp = jax.random.split(key)
    x = jax.random.normal(kx, (batch, num_features), dtype=jnp.float32)
    weight, bias, prelu_a = init_params(kp, num_features)

    out = jax.block_until_ready(
        clfnet_forward(x, weight, bias, prelu_a, force_pallas=True))
    y_ref = _ref_forward(x, weight, bias, prelu_a)
    assert out.shape == (batch, 1)
    assert jnp.allclose(out, y_ref, atol=1e-5, rtol=1e-5)

    # Larger case: multi-tile grid, partial last block (no host-side padding).
    B2, F2 = 2000, 128
    x2 = jax.random.normal(jax.random.PRNGKey(1), (B2, F2), dtype=jnp.float32)
    w2, b2, a2 = init_params(jax.random.PRNGKey(2), F2)
    out2 = jax.block_until_ready(clfnet_forward(x2, w2, b2, a2))
    ref2 = _ref_forward(x2, w2, b2, a2)
    assert out2.shape == (B2, 1)
    assert jnp.allclose(out2, ref2, atol=1e-4, rtol=1e-4)

    # bf16 input: native-dtype DMA into the kernel, f32 math inside.
    B3, F3 = 1024, 256
    x3 = jax.random.normal(jax.random.PRNGKey(3), (B3, F3),
                           dtype=jnp.float32).astype(jnp.bfloat16)
    w3, b3, a3 = init_params(jax.random.PRNGKey(4), F3)
    out3 = jax.block_until_ready(clfnet_forward(x3, w3, b3, a3))
    ref3 = _ref_forward(x3.astype(jnp.float32), w3, b3, a3)
    assert out3.shape == (B3, 1)
    assert jnp.allclose(out3, ref3, atol=1e-3, rtol=1e-3)

    print("KERNEL_OK")
</pallas_src>

<mosaic_0001>
module attributes {stable_mosaic.version = 11 : i64} {
  func.func @_clfnet_kernel(%arg0: i32, %arg1: memref<8x32xf32, #tpu.memory_space<vmem>>, %arg2: memref<1x32xf32, #tpu.memory_space<vmem>>, %arg3: memref<1xf32, #tpu.memory_space<smem>>, %arg4: memref<1xf32, #tpu.memory_space<smem>>, %arg5: memref<1x1x8xf32, #tpu.memory_space<vmem>>) attributes {dimension_semantics = [#tpu.dimension_semantics<parallel>], iteration_bounds = array<i64: 1>, scalar_prefetch = 0 : i64, scratch_operands = 0 : i64, tpu.core_type = #tpu.core_type<tc>, window_params = [{transform_indices = @transform_0, window_bounds = array<i64: 8, 32>}, {pipeline_mode = #tpu.pipeline_mode<synchronous>, transform_indices = @transform_1, window_bounds = array<i64: 1, 32>}, {transform_indices = @transform_2, window_bounds = array<i64: 1>}, {transform_indices = @transform_3, window_bounds = array<i64: 1>}, {transform_indices = @transform_4, window_bounds = array<i64: 1, 1, 8>}]} {
    %c0 = arith.constant 0 : index
    %c0_0 = arith.constant 0 : index
    %0 = vector.load %arg1[%c0, %c0_0] : memref<8x32xf32, #tpu.memory_space<vmem>>, vector<8x32xf32>
    %c0_1 = arith.constant 0 : index
    %c0_2 = arith.constant 0 : index
    %1 = vector.load %arg2[%c0_1, %c0_2] : memref<1x32xf32, #tpu.memory_space<vmem>>, vector<1x32xf32>
    %c0_3 = arith.constant 0 : index
    %2 = memref.load %arg3[%c0_3] : memref<1xf32, #tpu.memory_space<smem>>
    %c0_4 = arith.constant 0 : index
    %3 = memref.load %arg4[%c0_4] : memref<1xf32, #tpu.memory_space<smem>>
    %cst = arith.constant dense<0.000000e+00> : vector<1x8xf32>
    %4 = tpu.matmul %1, %0, %cst {dimension_numbers = #tpu.dot_dimension_numbers<[1], [1], [0], [0], [0, 0, 1, 0], [], []>} : vector<1x32xf32>, vector<8x32xf32>, vector<1x8xf32> -> vector<1x8xf32>
    %5 = vector.broadcast %2 : f32 to vector<1x8xf32>
    %6 = arith.addf %4, %5 : vector<1x8xf32>
    %cst_5 = arith.constant 0.000000e+00 : f32
    %7 = vector.broadcast %cst_5 : f32 to vector<1x8xf32>
    %8 = arith.maximumf %6, %7 : vector<1x8xf32>
    %cst_6 = arith.constant 0.000000e+00 : f32
    %9 = vector.broadcast %cst_6 : f32 to vector<1x8xf32>
    %10 = arith.minimumf %6, %9 : vector<1x8xf32>
    %11 = vector.broadcast %3 : f32 to vector<1x8xf32>
    %12 = arith.mulf %11, %10 : vector<1x8xf32>
    %13 = arith.addf %8, %12 : vector<1x8xf32>
    %cst_7 = arith.constant 0.000000e+00 : f32
    %14 = vector.broadcast %cst_7 : f32 to vector<1x8xf32>
    %15 = arith.maximumf %13, %14 : vector<1x8xf32>
    %16 = vector.shape_cast %15 : vector<1x8xf32> to vector<1x1x8xf32>
    %c0_8 = arith.constant 0 : index
    %c0_9 = arith.constant 0 : index
    %c0_10 = arith.constant 0 : index
    %17 = vector.load %arg5[%c0_8, %c0_9, %c0_10] : memref<1x1x8xf32, #tpu.memory_space<vmem>>, vector<1x1x8xf32>
    tpu.vector_store %arg5[%c0_8, %c0_9, %c0_10], %16 {strides = array<i32>} : memref<1x1x8xf32, #tpu.memory_space<vmem>>, vector<1x1x8xf32>,
    return
  }
  func.func @transform_0(%arg0: i32) -> (i32, i32) {
    %c0_i32 = arith.constant 0 : i32
    %c0_i32_0 = arith.constant 0 : i32
    return %arg0, %c0_i32 : i32, i32
  }
  func.func @transform_1(%arg0: i32) -> (i32, i32) {
    %c0_i32 = arith.constant 0 : i32
    %c0_i32_0 = arith.constant 0 : i32
    %c0_i32_1 = arith.constant 0 : i32
    return %c0_i32, %c0_i32_0 : i32, i32
  }
  func.func @transform_2(%arg0: i32) -> i32 {
    %c0_i32 = arith.constant 0 : i32
    %c0_i32_0 = arith.constant 0 : i32
    return %c0_i32 : i32
  }
  func.func @transform_3(%arg0: i32) -> i32 {
    %c0_i32 = arith.constant 0 : i32
    %c0_i32_0 = arith.constant 0 : i32
    return %c0_i32 : i32
  }
  func.func @transform_4(%arg0: i32) -> (i32, i32, i32) {
    %c0_i32 = arith.constant 0 : i32
    %c0_i32_0 = arith.constant 0 : i32
    %c0_i32_1 = arith.constant 0 : i32
    return %arg0, %c0_i32, %c0_i32_0 : i32, i32, i32
  }
}

</mosaic_0001>

<llo_original>
// kernel: clfnet_forward.1
$region0: #{clfnet_forward.1}
  #allocation0 [shape = 'u32[]', space=smem, size = 0x4, offset = 0x4, fixed_abs, tag = 'smem constant byte address 0x4 - core index']
  #allocation1 [shape = 'u32[144,128]{1,0:T(1,128)}', space=vmem, size = 0x12000, scoped, tag = 'internal scratch']
  #allocation2 [shape = 'f32[1]{0:T(128)S(6)}', space=smem, size = 0x200, scoped, tag = 'scoped memory for clfnet_forward.1']
  #allocation3 [shape = 'f32[1]{0:T(128)S(6)}', space=smem, size = 0x200, scoped, tag = 'scoped memory for clfnet_forward.1']
  %s0 = inlined_call_operand.hbm [shape: f32[8,32], index: 0, kind: input, shape index: {}]
  %s1 = inlined_call_operand.vmem [shape: f32[1,32], index: 1, kind: input, shape index: {}]
  %s2 = inlined_call_operand.<no memory space> [shape: f32[1], index: 2, kind: input, shape index: {}]
  %s3 = inlined_call_operand.<no memory space> [shape: f32[1], index: 3, kind: input, shape index: {}]
  %s4 = inlined_call_operand.hbm [shape: f32[1,1,8], index: 4, kind: output, shape index: {}]
  %s5 = sld [smem:[#allocation0]]
  $region30: #{clfnet_forward.1} parent=0
    _
  %s7 = ssub.s32 1, %s5
  %s8 = scalar_select 0, %s7, %s5
  %9 = sst [smem:[#allocation2]] %s2
  %10 = sst [smem:[#allocation3]] %s3
  $region1: #{clfnet_forward.1} parent=0
    #allocation4 [shape = 'u8[4096]{0}', space=vmem, size = 0x1000, scoped, tag = 'input window, operand 0, single buffered']
    #allocation5 [shape = 's32[1]{0}', space=sflag, size = 0x4, scoped, tag = 'scoped memory for clfnet_forward.1']
    #allocation6 [shape = 's32[1]{0}', space=sflag, size = 0x4, scoped, tag = 'scoped memory for clfnet_forward.1']
    #allocation7 [shape = 'u8[512]{0}', space=vmem, size = 0x400, scoped, tag = 'output window, operand 0, single buffered']
    %11 = vsyncpa [#allocation5], 0
    %12 = vsyncpa [#allocation6], 0
    // Predicated region
    $region2: #{clfnet_forward.1} parent=1 // pred_check
      _
    $region3: #{clfnet_forward.1} parent=1 // pred_check_branch
      %14 = sbr.rel (0) target = $region5
    $region4: #{clfnet_forward.1} parent=1 // pred_region
      %s16 = ssub.s32 128, 128
      %17 = vsyncadd [#allocation5], %s16
      %s19 = sshll.u32 [#allocation4], 4
      %s20 = int_to_ptr.vmem [resolvable:$true] %s19
      %22 = dma.hbm_to_vmem [thread:$0]  %s0, 128, %s20, [#allocation5]
    $region5: #{clfnet_forward.1} parent=1 // pred_fallthru
      _
    // Predicated region
    $region6: #{clfnet_forward.1} parent=1 // pred_check
      _
    $region7: #{clfnet_forward.1} parent=1 // pred_check_branch
      %24 = sbr.rel (0) target = $region9
    $region8: #{clfnet_forward.1} parent=1 // pred_region
      _
    $region9: #{clfnet_forward.1} parent=1 // pred_fallthru
      _
    // Predicated region
    $region10: #{clfnet_forward.1} parent=1 // pred_check
      _
    $region11: #{clfnet_forward.1} parent=1 // pred_check_branch
      %26 = sbr.rel (0) target = $region13
    $region12: #{clfnet_forward.1} parent=1 // pred_region
      _
    $region13: #{clfnet_forward.1} parent=1 // pred_fallthru
      _
    // Predicated region
    $region14: #{clfnet_forward.1} parent=1 // pred_check
      _
    $region15: #{clfnet_forward.1} parent=1 // pred_check_branch
      %28 = sbr.rel (0) target = $region17
    $region16: #{clfnet_forward.1} parent=1 // pred_region
      _
    $region17: #{clfnet_forward.1} parent=1 // pred_fallthru
      _
    // Predicated region
    $region18: #{clfnet_forward.1} parent=1 // pred_check
      _
    $region19: #{clfnet_forward.1} parent=1 // pred_check_branch
      %30 = sbr.rel (0) target = $region21
    $region20: #{clfnet_forward.1} parent=1 // pred_region
      %31 = dma.done [#allocation5], 128
    $region21: #{clfnet_forward.1} parent=1 // pred_fallthru
      _
    %v32 = vld [vmem:[#allocation4] sm:$0xff]
    %v33 = vld [vmem:[%s1] sm:$0x1]
    %s34 = sld [smem:[#allocation2]]
    %s35 = sld [smem:[#allocation3]]
    %v36 = vstv %s34
    %vm37 = vcmask 261120
    %v39 = vsel %vm37, %v33, 0
    %v42 = vsel %vm37, %v32, 0
    %44 = vmatprep.subr.mxu0 0.0
    %45 = vmatpush1.xpose.msra.mxu0 0.0
    %46 = vmatprep.subr.mxu0 0.0
    %47 = vmatpush1.xpose.msra.mxu0 0.0
    %48 = vmatprep.subr.mxu0 0.0
    %49 = vmatpush1.xpose.msra.mxu0 0.0
    %50 = vmatprep.subr.mxu0 0.0
    %51 = vmatpush1.xpose.msra.mxu0 0.0
    %52 = vmatprep.subr.mxu0 0.0
    %53 = vmatpush1.xpose.msra.mxu0 0.0
    %54 = vmatprep.subr.mxu0 0.0
    %55 = vmatpush1.xpose.msra.mxu0 0.0
    %56 = vmatprep.subr.mxu0 0.0
    %57 = vmatpush1.xpose.msra.mxu0 0.0
    %58 = vmatprep.subr.mxu0 0.0
    %59 = vmatpush1.xpose.msra.mxu0 0.0
    %60 = vmatprep.subr.mxu0 0.0
    %61 = vmatpush1.xpose.msra.mxu0 0.0
    %62 = vmatprep.subr.mxu0 0.0
    %63 = vmatpush1.xpose.msra.mxu0 0.0
    %64 = vmatprep.subr.mxu0 0.0
    %65 = vmatpush1.xpose.msra.mxu0 0.0
    %66 = vmatprep.subr.mxu0 0.0
    %67 = vmatpush1.xpose.msra.mxu0 0.0
    %68 = vmatprep.subr.mxu0 0.0
    %69 = vmatpush1.xpose.msra.mxu0 0.0
    %70 = vmatprep.subr.mxu0 0.0
    %71 = vmatpush1.xpose.msra.mxu0 0.0
    %72 = vmatprep.subr.mxu0 0.0
    %73 = vmatpush1.xpose.msra.mxu0 0.0
    %74 = vmatprep.subr.mxu0 0.0
    %75 = vmatpush1.xpose.msra.mxu0 %v42
    %76 = vmatprep.subr.mxu0 0.0
    %77 = vmatpush2.xpose.msra.mxu0 0.0
    %78 = vmatprep.subr.mxu0 0.0
    %79 = vmatpush2.xpose.msra.mxu0 0.0
    %80 = vmatprep.subr.mxu0 0.0
    %81 = vmatpush2.xpose.msra.mxu0 0.0
    %82 = vmatprep.subr.mxu0 0.0
    %83 = vmatpush2.xpose.msra.mxu0 0.0
    %84 = vmatprep.subr.mxu0 0.0
    %85 = vmatpush2.xpose.msra.mxu0 0.0
    %86 = vmatprep.subr.mxu0 0.0
    %87 = vmatpush2.xpose.msra.mxu0 0.0
    %88 = vmatprep.subr.mxu0 0.0
    %89 = vmatpush2.xpose.msra.mxu0 0.0
    %90 = vmatprep.subr.mxu0 0.0
    %91 = vmatpush2.xpose.msra.mxu0 0.0
    %92 = vmatprep.subr.mxu0 0.0
    %93 = vmatpush2.xpose.msra.mxu0 0.0
    %94 = vmatprep.subr.mxu0 0.0
    %95 = vmatpush2.xpose.msra.mxu0 0.0
    %96 = vmatprep.subr.mxu0 0.0
    %97 = vmatpush2.xpose.msra.mxu0 0.0
    %98 = vmatprep.subr.mxu0 0.0
    %99 = vmatpush2.xpose.msra.mxu0 0.0
    %100 = vmatprep.subr.mxu0 0.0
    %101 = vmatpush2.xpose.msra.mxu0 0.0
    %102 = vmatprep.subr.mxu0 0.0
    %103 = vmatpush2.xpose.msra.mxu0 0.0
    %104 = vmatprep.subr.mxu0 0.0
    %105 = vmatpush2.xpose.msra.mxu0 0.0
    %106 = vmatprep.subr.mxu0 0.0
    %107 = vmatpush2.xpose.msra.mxu0 0.0
    %108 = vmatprep.mubr.f32.mxu0 0.0
    %109 = vmatmul.mubr.f32.gmra.mxu0 %v39
    %v110 = vpop.f32.mrf.mxu0
    %v111 = vadd.f32 %v36, %v110
    %v112 = vpop.f32.mrf.mxu0
    %113 = vdwg.mxu0
    %v114 = vmax.f32 %v111, 0.0
    %v115 = vmin.f32 %v111, 0.0
    %v116 = vstv %s35
    %v117 = vmul.f32 %v116, %v115
    %v118 = vadd.f32 %v114, %v117
    %v119 = vmax.f32 %v118, 0.0
    %vm120 = vcmask 57344
    %121 = vst.msk [vmem:[#allocation7] sm:$0x1] %vm120, %v119
    // Predicated region
    $region22: #{clfnet_forward.1} parent=1 // pred_check
      _
    $region23: #{clfnet_forward.1} parent=1 // pred_check_branch
      %123 = sbr.rel (0) target = $region25
    $region24: #{clfnet_forward.1} parent=1 // pred_region
      %s125 = ssub.s32 16, 16
      %126 = vsyncadd [#allocation6], %s125
      %s128 = sshll.u32 [#allocation7], 4
      %s129 = int_to_ptr.vmem [resolvable:$true] %s128
      %131 = dma.vmem_to_hbm [thread:$0]  %s129, 16, %s4, [#allocation6]
    $region25: #{clfnet_forward.1} parent=1 // pred_fallthru
      _
    // Predicated region
    $region26: #{clfnet_forward.1} parent=1 // pred_check
      _
    $region27: #{clfnet_forward.1} parent=1 // pred_check_branch
      %133 = sbr.rel (0) target = $region29
    $region28: #{clfnet_forward.1} parent=1 // pred_region
      %134 = dma.done [#allocation6], 16
    $region29: #{clfnet_forward.1} parent=1 // pred_fallthru
      _
    %135 = vsyncpa [#allocation5], 1
    %136 = vsyncpa [#allocation6], 1

</llo_original>
